<compile_context>
chip_gen: v7x
topology: tpu7x:2x2x1
jax: 0.10.0
libtpu: 0.0.40
codegen_flags: <defaults>
</compile_context>

<pallas_src>
import functools

import jax
import jax.numpy as jnp
from jax.experimental import pallas as pl
from jax.experimental.pallas import tpu as pltpu


def _round_up(v, m):
    return (v + m - 1) // m * m


# -----------------------------------------------------------------------------
# Pallas kernel: deform-conv matmul (bf16 MXU) + folded BN shift + exact GELU
# -----------------------------------------------------------------------------
def _dconv_bn_gelu_kernel(col_ref, w_ref, shift_ref, out_ref):
    # col_ref:   (TM, C*K*K)        bf16  (streamed row tile)
    # w_ref:     (C*K*K, Nout_pad)  bf16  (resident; BN scale folded in)
    # shift_ref: (1, Nout_pad)      f32   (resident; BN shift)
    # out_ref:   (TM, Nout_pad)     f32   (lane-dense: Nout_pad % 128 == 0)
    acc = jnp.dot(col_ref[...], w_ref[...], preferred_element_type=jnp.float32)
    y = acc + shift_ref[...]                          # eval-mode BatchNorm2d
    # exact GELU: 0.5 * y * (1 + erf(y / sqrt(2)))
    out_ref[...] = 0.5 * y * (1.0 + jax.lax.erf(y * 0.7071067811865475))


def _fused_dconv_bn_gelu(cols, w_scaled, shift, n_out, *, tm):
    """cols: (N, K) bf16, w_scaled: (K, Nout_pad) bf16, shift: (1, Nout_pad) f32.
    Returns (N, n_out) f32."""
    n_rows, k_dim = cols.shape
    n_out_pad = w_scaled.shape[1]

    # Keep >=2 grid steps when possible so the "parallel" axis can shard across
    # v7x's two TensorCores; round the tile height to the bf16 sublane tile (16).
    tm_eff = max(16, min(tm, _round_up(pl.cdiv(n_rows, 2), 16)))
    n_tiles = pl.cdiv(n_rows, tm_eff)
    n_rows_pad = n_tiles * tm_eff
    if n_rows_pad != n_rows:
        cols = jnp.pad(cols, ((0, n_rows_pad - n_rows), (0, 0)))

    cost = pl.CostEstimate(
        flops=2 * n_rows_pad * k_dim * n_out_pad,
        transcendentals=n_rows_pad * n_out_pad,
        bytes_accessed=(cols.size * 2 + w_scaled.size * 2
                        + shift.size * 4 + n_rows_pad * n_out_pad * 4),
    )

    out = pl.pallas_call(
        _dconv_bn_gelu_kernel,
        out_shape=jax.ShapeDtypeStruct((n_rows_pad, n_out_pad), jnp.float32),
        grid=(n_tiles,),
        in_specs=[
            pl.BlockSpec((tm_eff, k_dim), lambda i: (i, 0)),      # streamed LHS
            pl.BlockSpec((k_dim, n_out_pad), lambda i: (0, 0)),   # resident weight
            pl.BlockSpec((1, n_out_pad), lambda i: (0, 0)),       # resident shift
        ],
        out_specs=pl.BlockSpec((tm_eff, n_out_pad), lambda i: (i, 0)),
        compiler_params=pltpu.CompilerParams(dimension_semantics=("parallel",)),
        cost_estimate=cost,
    )(cols, w_scaled, shift)

    return out[:n_rows, :n_out]


# -----------------------------------------------------------------------------
# Plain-JAX glue: patch extraction + deformable bilinear sampling (im2col)
# -----------------------------------------------------------------------------
def _extract_patches(x_nhwc, ksize, stride):
    """Non-overlapping KxK / stride-K patches -> (B*Ho*Wo, C*K*K), (ci,ki,kj) order."""
    b, h, w, c = x_nhwc.shape
    ho, wo = h // stride, w // stride
    p = x_nhwc.reshape(b, ho, ksize, wo, ksize, c)
    p = jnp.transpose(p, (0, 1, 3, 5, 2, 4))           # (B, Ho, Wo, C, ki, kj)
    return p.reshape(b * ho * wo, c * ksize * ksize)


def _deform_im2col(x_nhwc, offsets, ksize, stride, out_dtype=jnp.bfloat16):
    """Bilinear-sample deformable columns. mmcv offset channel layout:
    channel 2*(i*K+j) = dy, 2*(i*K+j)+1 = dx. Out-of-image samples contribute 0."""
    b, h, w, c = x_nhwc.shape
    _, ho, wo, _ = offsets.shape
    k = ksize

    base_y = (jnp.arange(ho)[:, None, None, None] * stride
              + jnp.arange(k)[None, None, :, None]).astype(jnp.float32)
    base_x = (jnp.arange(wo)[None, :, None, None] * stride
              + jnp.arange(k)[None, None, None, :]).astype(jnp.float32)

    off = offsets.reshape(b, ho, wo, k, k, 2)
    py = base_y[None] + off[..., 0]                    # (B, Ho, Wo, K, K)
    px = base_x[None] + off[..., 1]

    y0 = jnp.floor(py)
    x0 = jnp.floor(px)
    ly, lx = py - y0, px - x0
    hy, hx = 1.0 - ly, 1.0 - lx

    x_flat = x_nhwc.reshape(b, h * w, c)

    def corner(yc, xc, wgt):
        valid = (yc >= 0) & (yc < h) & (xc >= 0) & (xc < w)
        yi = jnp.clip(yc, 0, h - 1).astype(jnp.int32)
        xi = jnp.clip(xc, 0, w - 1).astype(jnp.int32)
        idx = (yi * w + xi).reshape(b, -1)
        vals = jnp.take_along_axis(x_flat, idx[..., None], axis=1)
        vals = vals.reshape(b, ho, wo, k, k, c)
        return vals * (wgt * valid.astype(jnp.float32))[..., None]

    cols = (corner(y0, x0, hy * hx) + corner(y0, x0 + 1.0, hy * lx)
            + corner(y0 + 1.0, x0, ly * hx) + corner(y0 + 1.0, x0 + 1.0, ly * lx))
    # reorder to (ci, ki, kj) flattening to match conv-weight flattening
    cols = jnp.transpose(cols, (0, 1, 2, 5, 3, 4))
    return cols.reshape(b * ho * wo, c * k * k).astype(out_dtype)


# -----------------------------------------------------------------------------
# One-time parameter preparation (outside the jitted forward)
# -----------------------------------------------------------------------------
def prepare_params(params, C, matmul_dtype=jnp.bfloat16):
    k = 2
    n_out = 2 * C
    n_out_pad = _round_up(n_out, 128)
    eps = 1e-5

    # conv_offset (standard 2x2/s2 conv): (8, C, 2, 2) -> (C*4, 8), flattening (ci,ki,kj)
    w_off2d = jnp.transpose(params["w_off"], (1, 2, 3, 0)).reshape(C * k * k, 2 * k * k)
    b_off = params["b_off"].reshape(1, 2 * k * k).astype(jnp.float32)

    # deform conv weight: (2C, C, 2, 2) -> (C*4, 2C), fold BN scale into columns
    w_d2d = jnp.transpose(params["w_dconv"], (1, 2, 3, 0)).reshape(C * k * k, n_out)
    scale = params["bn_gamma"] / jnp.sqrt(params["bn_var"] + eps)          # (2C,)
    shift = params["bn_beta"] - params["bn_mean"] * scale                  # (2C,)
    w_scaled = (w_d2d * scale[None, :]).astype(matmul_dtype)
    w_scaled = jnp.pad(w_scaled, ((0, 0), (0, n_out_pad - n_out)))
    shift_p = jnp.pad(shift.astype(jnp.float32), (0, n_out_pad - n_out)).reshape(1, n_out_pad)

    return {"w_off2d": w_off2d.astype(jnp.float32), "b_off": b_off,
            "w_scaled": w_scaled, "shift": shift_p, "n_out": n_out}


# -----------------------------------------------------------------------------
# Module forward
# -----------------------------------------------------------------------------
def deformable_patch_merging(x, H, W, prep, *, tm=512):
    """x: (B, H*W, C) float32. Returns (out (B, new_H*new_W, 2C) f32, new_H, new_W)."""
    k = 2
    stride = 2
    B, L, C = x.shape
    assert L == H * W
    new_H, new_W = H // stride, W // stride

    x_nhwc = x.reshape(B, H, W, C)

    # --- conv_offset: tiny (N, 4C) @ (4C, 8) GEMM, left to XLA (f32 for coords) ---
    patches = _extract_patches(x_nhwc, k, stride)                       # (N, C*4)
    offsets = (patches @ prep["w_off2d"] + prep["b_off"]).reshape(B, new_H, new_W, 2 * k * k)

    # --- deformable bilinear im2col (fused XLA gather+combine -> bf16) ----------
    cols = _deform_im2col(x_nhwc, offsets, k, stride)                   # (N, C*4) bf16

    # --- deform-conv matmul + BN(eval, folded) + exact GELU, fused Pallas -------
    out = _fused_dconv_bn_gelu(cols, prep["w_scaled"], prep["shift"],
                               prep["n_out"], tm=tm)                    # (N, 2C) f32

    # rows already in (b, ho, wo) row-major order == .flatten(2).transpose(1, 2)
    return out.reshape(B, new_H * new_W, 2 * C), new_H, new_W


# -----------------------------------------------------------------------------
# Reference (pure JAX, f32 end-to-end) for a correctness check
# -----------------------------------------------------------------------------
def _reference(x, H, W, params):
    k, stride = 2, 2
    B, L, C = x.shape
    x_nhwc = x.reshape(B, H, W, C)
    patches = _extract_patches(x_nhwc, k, stride)
    w_off2d = jnp.transpose(params["w_off"], (1, 2, 3, 0)).reshape(C * 4, 8)
    offsets = (patches @ w_off2d + params["b_off"]).reshape(B, H // 2, W // 2, 8)
    cols = _deform_im2col(x_nhwc, offsets, k, stride, out_dtype=jnp.float32)
    w_d2d = jnp.transpose(params["w_dconv"], (1, 2, 3, 0)).reshape(C * 4, 2 * C)
    conv = cols @ w_d2d
    eps = 1e-5
    y = (conv - params["bn_mean"]) / jnp.sqrt(params["bn_var"] + eps)
    y = y * params["bn_gamma"] + params["bn_beta"]
    y = jax.nn.gelu(y, approximate=False)
    return y.reshape(B, (H // 2) * (W // 2), 2 * C)


# -----------------------------------------------------------------------------
if __name__ == "__main__":
    B, H, W, dim = 2, 16, 16, 4          # x: (B, H*W, C) = (2, 256, 4)
    C_out = 2 * dim

    key = jax.random.PRNGKey(0)
    kx, kw, ko, kb, kg, kbt, km, kv = jax.random.split(key, 8)

    x = jax.random.normal(kx, (B, H * W, dim), jnp.float32)

    params = {
        # DeformConv2d weight: (C_out, C_in, kh, kw), no bias (mmcv default)
        "w_dconv": jax.random.normal(kw, (C_out, dim, 2, 2), jnp.float32) * 0.2,
        # conv_offset weight/bias: mmcv zero-inits these; use small nonzero values
        # so the deformable sampling path is exercised.
        "w_off": jax.random.normal(ko, (8, dim, 2, 2), jnp.float32) * 0.1,
        "b_off": jax.random.normal(kb, (8,), jnp.float32) * 0.1,
        # BatchNorm2d(2C), eval-mode running statistics
        "bn_gamma": 1.0 + 0.1 * jax.random.normal(kg, (C_out,), jnp.float32),
        "bn_beta": 0.1 * jax.random.normal(kbt, (C_out,), jnp.float32),
        "bn_mean": 0.1 * jax.random.normal(km, (C_out,), jnp.float32),
        "bn_var": 0.5 + jnp.abs(jax.random.normal(kv, (C_out,), jnp.float32)),
    }

    prep = prepare_params(params, dim)    # one-time transposes / BN folding / padding

    fwd = jax.jit(functools.partial(deformable_patch_merging, H=H, W=W, prep=prep))
    out, new_H, new_W = fwd(x)
    jax.block_until_ready(out)

    ref = _reference(x, H, W, params)
    assert out.shape == (B, (H // 2) * (W // 2), C_out), out.shape
    assert new_H == H // 2 and new_W == W // 2
    # bf16 MXU operands (f32 accumulate / f32 epilogue) -> relaxed tolerance vs f32 ref
    assert jnp.allclose(out, ref, atol=3e-2, rtol=3e-2), float(jnp.max(jnp.abs(out - ref)))

    print("KERNEL_OK")
</pallas_src>

<mosaic_0001>
module attributes {stable_mosaic.version = 11 : i64} {
  func.func @_dconv_bn_gelu_kernel(%arg0: i32, %arg1: memref<64x16xbf16, #tpu.memory_space<vmem>>, %arg2: memref<16x128xbf16, #tpu.memory_space<vmem>>, %arg3: memref<1x128xf32, #tpu.memory_space<vmem>>, %arg4: memref<64x128xf32, #tpu.memory_space<vmem>>) attributes {dimension_semantics = [#tpu.dimension_semantics<parallel>], iteration_bounds = array<i64: 2>, scalar_prefetch = 0 : i64, scratch_operands = 0 : i64, tpu.core_type = #tpu.core_type<tc>, window_params = [{transform_indices = @transform_0, window_bounds = array<i64: 64, 16>}, {pipeline_mode = #tpu.pipeline_mode<synchronous>, transform_indices = @transform_1, window_bounds = array<i64: 16, 128>}, {pipeline_mode = #tpu.pipeline_mode<synchronous>, transform_indices = @transform_2, window_bounds = array<i64: 1, 128>}, {transform_indices = @transform_3, window_bounds = array<i64: 64, 128>}]} {
    %c0 = arith.constant 0 : index
    %c0_0 = arith.constant 0 : index
    %0 = vector.load %arg1[%c0, %c0_0] : memref<64x16xbf16, #tpu.memory_space<vmem>>, vector<64x16xbf16>
    %c0_1 = arith.constant 0 : index
    %c0_2 = arith.constant 0 : index
    %1 = vector.load %arg2[%c0_1, %c0_2] : memref<16x128xbf16, #tpu.memory_space<vmem>>, vector<16x128xbf16>
    %cst = arith.constant dense<0.000000e+00> : vector<64x128xf32>
    %2 = tpu.matmul %0, %1, %cst {dimension_numbers = #tpu.dot_dimension_numbers<[1], [0], [0], [1], [0, 0, 1, 1], [], []>} : vector<64x16xbf16>, vector<16x128xbf16>, vector<64x128xf32> -> vector<64x128xf32>
    %c0_3 = arith.constant 0 : index
    %c0_4 = arith.constant 0 : index
    %3 = vector.load %arg3[%c0_3, %c0_4] : memref<1x128xf32, #tpu.memory_space<vmem>>, vector<1x128xf32>
    %4 = vector.broadcast %3 : vector<1x128xf32> to vector<64x128xf32>
    %5 = arith.addf %2, %4 : vector<64x128xf32>
    %cst_5 = arith.constant 5.000000e-01 : f32
    %6 = vector.broadcast %cst_5 : f32 to vector<64x128xf32>
    %7 = arith.mulf %6, %5 : vector<64x128xf32>
    %cst_6 = arith.constant 0.707106769 : f32
    %8 = vector.broadcast %cst_6 : f32 to vector<64x128xf32>
    %9 = arith.mulf %5, %8 : vector<64x128xf32>
    %10 = math.erf %9 : vector<64x128xf32>
    %cst_7 = arith.constant 1.000000e+00 : f32
    %11 = vector.broadcast %cst_7 : f32 to vector<64x128xf32>
    %12 = arith.addf %11, %10 : vector<64x128xf32>
    %13 = arith.mulf %7, %12 : vector<64x128xf32>
    %c0_8 = arith.constant 0 : index
    %c0_9 = arith.constant 0 : index
    %14 = vector.load %arg4[%c0_8, %c0_9] : memref<64x128xf32, #tpu.memory_space<vmem>>, vector<64x128xf32>
    tpu.vector_store %arg4[%c0_8, %c0_9], %13 {strides = array<i32>} : memref<64x128xf32, #tpu.memory_space<vmem>>, vector<64x128xf32>,
    return
  }
  func.func @transform_0(%arg0: i32) -> (i32, i32) {
    %c0_i32 = arith.constant 0 : i32
    %c0_i32_0 = arith.constant 0 : i32
    return %arg0, %c0_i32 : i32, i32
  }
  func.func @transform_1(%arg0: i32) -> (i32, i32) {
    %c0_i32 = arith.constant 0 : i32
    %c0_i32_0 = arith.constant 0 : i32
    %c0_i32_1 = arith.constant 0 : i32
    return %c0_i32, %c0_i32_0 : i32, i32
  }
  func.func @transform_2(%arg0: i32) -> (i32, i32) {
    %c0_i32 = arith.constant 0 : i32
    %c0_i32_0 = arith.constant 0 : i32
    %c0_i32_1 = arith.constant 0 : i32
    return %c0_i32, %c0_i32_0 : i32, i32
  }
  func.func @transform_3(%arg0: i32) -> (i32, i32) {
    %c0_i32 = arith.constant 0 : i32
    %c0_i32_0 = arith.constant 0 : i32
    return %arg0, %c0_i32 : i32, i32
  }
}

</mosaic_0001>

<llo_original>
// kernel: deformable_patch_merging.1
$region0: #{deformable_patch_merging.1}
  #allocation0 [shape = 'u32[]', space=smem, size = 0x4, offset = 0x4, fixed_abs, tag = 'smem constant byte address 0x4 - core index']
  #allocation1 [shape = 'u32[144,128]{1,0:T(1,128)}', space=vmem, size = 0x12000, scoped, tag = 'internal scratch']
  %s0 = inlined_call_operand.vmem [shape: bf16[128,16], index: 0, kind: input, shape index: {}]
  %s1 = inlined_call_operand.vmem [shape: bf16[16,128], index: 1, kind: input, shape index: {}]
  %s2 = inlined_call_operand.vmem [shape: f32[1,128], index: 2, kind: input, shape index: {}]
  %s3 = inlined_call_operand.vmem [shape: f32[128,128], index: 3, kind: output, shape index: {}]
  %s4 = sld [smem:[#allocation0]]
  $region45: #{deformable_patch_merging.1} parent=0
    _
  %s6 = ssub.s32 1, %s4
  %s7 = scalar_select 0, %s6, %s4
  loop: start=0, step=1, limit=4
  $region2: #{deformable_patch_merging.1} parent=0 // loop_pre_header
    _
  $region3: #{deformable_patch_merging.1} parent=0 // loop_header
    %s9 = sphi 0, %s13
    %p10 = scmp.ge.s32.totalorder %s9, 4
    %s19 = sphi 0, %s21
    %s22 = sphi 0, %s19
    %s23 = sphi 0, %s22
    %s39 = sphi 0, %s23
    %s43 = sphi 0, %s43
    %s45 = sphi 0, %s43
    %s46 = sphi 0, %s45
    %s60 = sphi 0, %s46
    %s64 = sphi 0, %s64
    %s66 = sphi 0, %s64
    %s67 = sphi 0, %s66
    %s81 = sphi 0, %s67
    %s87 = sphi 0, %s89
    %s90 = sphi 0, %s87
    %s91 = sphi 0, %s90
    %s107 = sphi 0, %s91
  $region4: #{deformable_patch_merging.1} parent=0 // loop_header_branch
    %12 = sbr.rel (%p10) target = $region8
  $region5: #{deformable_patch_merging.1} parent=0 // loop_body
    %s14 = ssub.s32 %s9, 1
    %s15 = ssub.s32 %s9, 2
    %s16 = sadd.s32 %s9, 1
    %s17 = ssub.s32 %s9, %s16
    %p18 = scmp.eq.s32.totalorder %s17, 0
    %s20 = sadd.s32 %s19, 1
    %s21 = scalar_select %p18, %s19, %s20
    %p24 = pneg %p18
    %p25 = scmp.eq.s32.totalorder %s9, 1
    %p26 = por %p24, %p25
    %p27 = scmp.ne.s32.totalorder %s19, %s22
    %p28 = scmp.eq.s32.totalorder %s9, 0
    %p29 = por %p27, %p28
    %p30 = scmp.ne.s32.totalorder %s19, %s22
    %p31 = scmp.eq.s32.totalorder %s14, 1
    %p32 = por %p30, %p31
    %p33 = scmp.ne.s32.totalorder %s22, %s23
    %p34 = scmp.eq.s32.totalorder %s14, 0
    %p35 = por %p33, %p34
    %p36 = scmp.ne.s32.totalorder %s22, %s23
    %p37 = scmp.eq.s32.totalorder %s15, 1
    %p38 = por %p36, %p37
    %p40 = scmp.ne.s32.totalorder %s23, %s39
    %p41 = scmp.eq.s32.totalorder %s15, 0
    %p42 = por %p40, %p41
    %s44 = sadd.s32 %s43, 1
    %p47 = scmp.eq.s32.totalorder %s9, 1
    %p48 = scmp.ne.s32.totalorder %s43, %s45
    %p49 = scmp.eq.s32.totalorder %s9, 0
    %p50 = por %p48, %p49
    %p51 = scmp.ne.s32.totalorder %s43, %s45
    %p52 = scmp.eq.s32.totalorder %s14, 1
    %p53 = por %p51, %p52
    %p54 = scmp.ne.s32.totalorder %s45, %s46
    %p55 = scmp.eq.s32.totalorder %s14, 0
    %p56 = por %p54, %p55
    %p57 = scmp.ne.s32.totalorder %s45, %s46
    %p58 = scmp.eq.s32.totalorder %s15, 1
    %p59 = por %p57, %p58
    %p61 = scmp.ne.s32.totalorder %s46, %s60
    %p62 = scmp.eq.s32.totalorder %s15, 0
    %p63 = por %p61, %p62
    %s65 = sadd.s32 %s64, 1
    %p68 = scmp.eq.s32.totalorder %s9, 1
    %p69 = scmp.ne.s32.totalorder %s64, %s66
    %p70 = scmp.eq.s32.totalorder %s9, 0
    %p71 = por %p69, %p70
    %p72 = scmp.ne.s32.totalorder %s64, %s66
    %p73 = scmp.eq.s32.totalorder %s14, 1
    %p74 = por %p72, %p73
    %p75 = scmp.ne.s32.totalorder %s66, %s67
    %p76 = scmp.eq.s32.totalorder %s14, 0
    %p77 = por %p75, %p76
    %p78 = scmp.ne.s32.totalorder %s66, %s67
    %p79 = scmp.eq.s32.totalorder %s15, 1
    %p80 = por %p78, %p79
    %p82 = scmp.ne.s32.totalorder %s67, %s81
    %p83 = scmp.eq.s32.totalorder %s15, 0
    %p84 = por %p82, %p83
    %s85 = ssub.s32 %s9, %s16
    %p86 = scmp.eq.s32.totalorder %s85, 0
    %s88 = sadd.s32 %s87, 1
    %s89 = scalar_select %p86, %s87, %s88
    %p92 = pneg %p86
    %p93 = scmp.eq.s32.totalorder %s9, 1
    %p94 = por %p92, %p93
    %p95 = scmp.ne.s32.totalorder %s87, %s90
    %p96 = scmp.eq.s32.totalorder %s9, 0
    %p97 = por %p95, %p96
    %p98 = scmp.ne.s32.totalorder %s87, %s90
    %p99 = scmp.eq.s32.totalorder %s14, 1
    %p100 = por %p98, %p99
    %p101 = scmp.ne.s32.totalorder %s90, %s91
    %p102 = scmp.eq.s32.totalorder %s14, 0
    %p103 = por %p101, %p102
    %p104 = scmp.ne.s32.totalorder %s90, %s91
    %p105 = scmp.eq.s32.totalorder %s15, 1
    %p106 = por %p104, %p105
    %p108 = scmp.ne.s32.totalorder %s91, %s107
    %p109 = scmp.eq.s32.totalorder %s15, 0
    %p110 = por %p108, %p109
    %p111 = scmp.le.s32.totalorder 1, %s9
    %p112 = scmp.lt.s32.totalorder %s9, 3
    %p113 = pnand %p111, %p112
    %p114 = pneg %p113
    // Predicated region
    $region9: #{deformable_patch_merging.1} parent=5 // pred_check
      _
    $region10: #{deformable_patch_merging.1} parent=5 // pred_check_branch
      %116 = sbr.rel (%p113) target = $region12
    $region11: #{deformable_patch_merging.1} parent=5 // pred_region
      %s117 = ssub.s32 %s9, 1
      // Predicated region
      $region13: #{deformable_patch_merging.1} parent=11 // pred_check
        %p118 = pneg %p56
      $region14: #{deformable_patch_merging.1} parent=11 // pred_check_branch
        %120 = sbr.rel (%p118) target = $region16
      $region15: #{deformable_patch_merging.1} parent=11 // pred_region
        _
      $region16: #{deformable_patch_merging.1} parent=11 // pred_fallthru
        _
      // Predicated region
      $region17: #{deformable_patch_merging.1} parent=11 // pred_check
        %p121 = pneg %p77
      $region18: #{deformable_patch_merging.1} parent=11 // pred_check_branch
        %123 = sbr.rel (%p121) target = $region20
      $region19: #{deformable_patch_merging.1} parent=11 // pred_region
        _
      $region20: #{deformable_patch_merging.1} parent=11 // pred_fallthru
        _
    $region12: #{deformable_patch_merging.1} parent=5 // pred_fallthru
      _
    %p124 = scmp.lt.s32.totalorder %s9, 2
    // Predicated region
    $region21: #{deformable_patch_merging.1} parent=5 // pred_check
      %p125 = pneg %p124
    $region22: #{deformable_patch_merging.1} parent=5 // pred_check_branch
      %127 = sbr.rel (%p125) target = $region24
    $region23: #{deformable_patch_merging.1} parent=5 // pred_region
      // Predicated region
      $region25: #{deformable_patch_merging.1} parent=23 // pred_check
        %p128 = pneg %p29
      $region26: #{deformable_patch_merging.1} parent=23 // pred_check_branch
        %130 = sbr.rel (%p128) target = $region28
      $region27: #{deformable_patch_merging.1} parent=23 // pred_region
        %s131 = smul.u32 8, %s9
        %p132 = scmp.lt.s32.totalorder %s131, 15
        %s133 = scalar_select %p132, %s131, 15
        %s134 = smul.addr %s133, 4
        %s135 = scalar_lea.vmem %s0, %s134
        %s136 = smul.u32 8, %s9
      $region28: #{deformable_patch_merging.1} parent=23 // pred_fallthru
        _
    $region24: #{deformable_patch_merging.1} parent=5 // pred_fallthru
      _
    %p137 = scmp.le.s32.totalorder 1, %s9
    %p138 = scmp.lt.s32.totalorder %s9, 3
    %p139 = pnand %p137, %p138
    %p140 = pneg %p139
    // Predicated region
    $region29: #{deformable_patch_merging.1} parent=5 // pred_check
      _
    $region30: #{deformable_patch_merging.1} parent=5 // pred_check_branch
      %142 = sbr.rel (%p139) target = $region32
    $region31: #{deformable_patch_merging.1} parent=5 // pred_region
      %s143 = ssub.s32 %s9, 1
      %s144 = smul.u32 8, %s14
      %p145 = scmp.lt.s32.totalorder %s144, 15
      %s146 = scalar_select %p145, %s144, 15
      %s147 = smul.addr %s146, 4
      %s148 = scalar_lea.vmem %s0, %s147
      %p149 = pneg %p35
      %p150 = pneg %p32
      %p151 = pneg %p56
      %p152 = pneg %p53
      %p153 = pneg %p77
      %p154 = pneg %p74
      %p155 = pneg %p103
      %p156 = pneg %p100
      %s157 = smul.u32 8, %s14
      %p158 = scmp.lt.s32.totalorder %s157, 15
      %s159 = scalar_select %p158, %s157, 15
      %s160 = smul.addr %s159, 8
      %s161 = scalar_lea.vmem %s3, %s160
      %s162 = smul.u32 8, %s14
      %p163 = scmp.lt.s32.totalorder %s162, 15
      %s164 = scalar_select %p163, %s162, 15
      %s165 = smul.addr %s164, 4
      %s166 = scalar_lea.vmem %s0, %s165
      %s167 = smul.u32 8, %s14
      %s168 = smul.u32 8, %s14
      %p169 = scmp.lt.s32.totalorder %s168, 15
      %s170 = scalar_select %p169, %s168, 15
      %s171 = smul.addr %s170, 8
      %s172 = scalar_lea.vmem %s3, %s171
      %s173 = smul.u32 8, %s14
      %v175 = vld [vmem:[%s166] sm:$0xf]
      %v176 = vld [vmem:[%s166 + $0x4] sm:$0xf]
      %v177 = vld [vmem:[%s166 + $0x8] sm:$0xf]
      %v178 = vld [vmem:[%s166 + $0xc] sm:$0xf]
      %v179 = vld [vmem:[%s166 + $0x10] sm:$0xf]
      %v180 = vld [vmem:[%s166 + $0x14] sm:$0xf]
      %v181 = vld [vmem:[%s166 + $0x18] sm:$0xf]
      %v182 = vld [vmem:[%s166 + $0x1c] sm:$0xf]
      %v183 = vld [vmem:[%s1] sm:$0xf]
      %v184 = vld [vmem:[%s1 + $0x4] sm:$0xf]
      %v185 = vld [vmem:[%s2] sm:$0x1]
      %v187 = vlaneseq
      %v188 = vshrl.u32 %v187, 7
      %v189 = vsub.s32 0, %v188
      %v190 = vrot.slane %v185, %v189
      %v200 = vunpack.c.l.b16 %v175
      %v201 = vunpack.c.l.b16 %v176
      %v202 = vunpack.c.l.b16 %v177
      %v203 = vunpack.c.l.b16 %v178
      %v204 = vunpack.c.l.b16 %v179
      %v205 = vunpack.c.l.b16 %v180
      %v206 = vunpack.c.l.b16 %v181
      %v207 = vunpack.c.l.b16 %v182
      %v208 = vpack.c.b16 %v201, %v200
      %v209 = vpack.c.b16 %v203, %v202
      %v210 = vpack.c.b16 %v205, %v204
      %v211 = vpack.c.b16 %v207, %v206
      %v214 = vunpack.c.l.b16 %v183
      %v215 = vunpack.c.l.b16 %v184
      %v216 = vpack.c.b16 %v215, %v214
      %vm218 = vcmask 130048
      %v220 = vsel %vm218, %v208, 0
      %v223 = vsel %vm218, %v209, 0
      %v226 = vsel %vm218, %v210, 0
      %v229 = vsel %vm218, %v211, 0
      %231 = vmatprep.subr.bf16.mxu0 0
      %232 = vmatpush1.bf16.msra.mxu0 %v216
      %233 = vmatprep.subr.bf16.mxu0 0
      %234 = vmatpush1.bf16.msra.mxu0 0
      %235 = vmatprep.subr.bf16.mxu0 0
      %236 = vmatpush1.bf16.msra.mxu0 0
      %237 = vmatprep.subr.bf16.mxu0 0
      %238 = vmatpush1.bf16.msra.mxu0 0
      %239 = vmatprep.subr.bf16.mxu0 0
      %240 = vmatpush1.bf16.msra.mxu0 0
      %241 = vmatprep.subr.bf16.mxu0 0
      %242 = vmatpush1.bf16.msra.mxu0 0
      %243 = vmatprep.subr.bf16.mxu0 0
      %244 = vmatpush1.bf16.msra.mxu0 0
      %245 = vmatprep.subr.bf16.mxu0 0
      %246 = vmatpush1.bf16.msra.mxu0 0
      %247 = vmatprep.subr.bf16.mxu0 0
      %248 = vmatpush1.bf16.msra.mxu0 0
      %249 = vmatprep.subr.bf16.mxu0 0
      %250 = vmatpush1.bf16.msra.mxu0 0
      %251 = vmatprep.subr.bf16.mxu0 0
      %252 = vmatpush1.bf16.msra.mxu0 0
      %253 = vmatprep.subr.bf16.mxu0 0
      %254 = vmatpush1.bf16.msra.mxu0 0
      %255 = vmatprep.subr.bf16.mxu0 0
      %256 = vmatpush1.bf16.msra.mxu0 0
      %257 = vmatprep.subr.bf16.mxu0 0
      %258 = vmatpush1.bf16.msra.mxu0 0
      %259 = vmatprep.subr.bf16.mxu0 0
      %260 = vmatpush1.bf16.msra.mxu0 0
      %261 = vmatprep.subr.bf16.mxu0 0
      %262 = vmatpush1.bf16.msra.mxu0 0
      %263 = vmatprep.mubr.bf16.mxu0 0
      %264 = vmatmul.mubr.bf16.gmra.mrb[0].mxu0 %v220
      %v265 = vpop.f32.mrb[0].mxu0
      %v266 = vadd.f32 %v190, %v265
      %v267 = vpop.f32.mrb[0].mxu0
      %v268 = vpop.f32.mrb[0].mxu0
      %v269 = vadd.f32 %v190, %v268
      %v270 = vpop.f32.mrb[0].mxu0
      %271 = vmatprep.mubr.bf16.mxu0 0
      %272 = vmatmul.mubr.bf16.gmra.mrb[0].mxu0 %v223
      %v273 = vpop.f32.mrb[0].mxu0
      %v274 = vadd.f32 %v190, %v273
      %v275 = vpop.f32.mrb[0].mxu0
      %v276 = vpop.f32.mrb[0].mxu0
      %v277 = vadd.f32 %v190, %v276
      %v278 = vpop.f32.mrb[0].mxu0
      %279 = vmatprep.mubr.bf16.mxu0 0
      %280 = vmatmul.mubr.bf16.gmra.mrb[0].mxu0 %v226
      %v281 = vpop.f32.mrb[0].mxu0
      %v282 = vadd.f32 %v190, %v281
      %v283 = vpop.f32.mrb[0].mxu0
      %v284 = vpop.f32.mrb[0].mxu0
      %v285 = vadd.f32 %v190, %v284
      %v286 = vpop.f32.mrb[0].mxu0
      %287 = vmatprep.mubr.bf16.mxu0 0
      %288 = vmatmul.mubr.bf16.gmra.mrb[0].mxu0 %v229
      %v289 = vpop.f32.mrb[0].mxu0
      %v290 = vadd.f32 %v190, %v289
      %v291 = vpop.f32.mrb[0].mxu0
      %v292 = vpop.f32.mrb[0].mxu0
      %v293 = vadd.f32 %v190, %v292
      %v294 = vpop.f32.mrb[0].mxu0
      %295 = vdwg.mxu0
      %v296 = vmul.f32 %v266, 0.5
      %v297 = vmul.f32 %v269, 0.5
      %v298 = vmul.f32 %v274, 0.5
      %v299 = vmul.f32 %v277, 0.5
      %v300 = vmul.f32 %v282, 0.5
      %v301 = vmul.f32 %v285, 0.5
      %v302 = vmul.f32 %v290, 0.5
      %v303 = vmul.f32 %v293, 0.5
      %v304 = vmul.f32 %v266, 0.70710677
      %v305 = vmul.f32 %v269, 0.70710677
      %v306 = vmul.f32 %v274, 0.70710677
      %v307 = vmul.f32 %v277, 0.70710677
      %v308 = vmul.f32 %v282, 0.70710677
      %v309 = vmul.f32 %v285, 0.70710677
      %v310 = vmul.f32 %v290, 0.70710677
      %v311 = vmul.f32 %v293, 0.70710677
      %v312 = verf.f32.pop %v304
      %v313 = verf.f32.pop %v305
      %v314 = verf.f32.pop %v306
      %v315 = verf.f32.pop %v307
      %v316 = verf.f32.pop %v308
      %v317 = verf.f32.pop %v309
      %v318 = verf.f32.pop %v310
      %v319 = verf.f32.pop %v311
      %v320 = vadd.f32 %v312, 1.0
      %v321 = vadd.f32 %v313, 1.0
      %v322 = vadd.f32 %v314, 1.0
      %v323 = vadd.f32 %v315, 1.0
      %v324 = vadd.f32 %v316, 1.0
      %v325 = vadd.f32 %v317, 1.0
      %v326 = vadd.f32 %v318, 1.0
      %v327 = vadd.f32 %v319, 1.0
      %v328 = vmul.f32 %v296, %v320
      %v329 = vmul.f32 %v297, %v321
      %v330 = vmul.f32 %v298, %v322
      %v331 = vmul.f32 %v299, %v323
      %v332 = vmul.f32 %v300, %v324
      %v333 = vmul.f32 %v301, %v325
      %v334 = vmul.f32 %v302, %v326
      %v335 = vmul.f32 %v303, %v327
      %336 = vst [vmem:[%s172] sm:$0xff] %v328
      %337 = vst [vmem:[%s172 + $0x8] sm:$0xff] %v329
      %338 = vst [vmem:[%s172 + $0x10] sm:$0xff] %v330
      %339 = vst [vmem:[%s172 + $0x18] sm:$0xff] %v331
      %340 = vst [vmem:[%s172 + $0x20] sm:$0xff] %v332
      %341 = vst [vmem:[%s172 + $0x28] sm:$0xff] %v333
      %342 = vst [vmem:[%s172 + $0x30] sm:$0xff] %v334
      %343 = vst [vmem:[%s172 + $0x38] sm:$0xff] %v335
      %s344 = smul.u32 8, %s14
      %p345 = scmp.lt.s32.totalorder %s344, 15
      %s346 = scalar_select %p345, %s344, 15
      %s347 = smul.addr %s346, 8
      %s348 = scalar_lea.vmem %s3, %s347
      // Predicated region
      $region33: #{deformable_patch_merging.1} parent=31 // pred_check
        %p349 = pneg %p100
      $region34: #{deformable_patch_merging.1} parent=31 // pred_check_branch
        %351 = sbr.rel (%p349) target = $region36
      $region35: #{deformable_patch_merging.1} parent=31 // pred_region
        %s352 = smul.u32 8, %s14
      $region36: #{deformable_patch_merging.1} parent=31 // pred_fallthru
        _
    $region32: #{deformable_patch_merging.1} parent=5 // pred_fallthru
      _
    %p353 = scmp.le.s32.totalorder 2, %s9
    // Predicated region
    $region37: #{deformable_patch_merging.1} parent=5 // pred_check
      %p354 = pneg %p353
    $region38: #{deformable_patch_merging.1} parent=5 // pred_check_branch
      %356 = sbr.rel (%p354) target = $region40
    $region39: #{deformable_patch_merging.1} parent=5 // pred_region
      %s357 = ssub.s32 %s9, 2
      // Predicated region
      $region41: #{deformable_patch_merging.1} parent=39 // pred_check
        %p358 = pneg %p106
      $region42: #{deformable_patch_merging.1} parent=39 // pred_check_branch
        %360 = sbr.rel (%p358) target = $region44
      $region43: #{deformable_patch_merging.1} parent=39 // pred_region
        %s361 = smul.u32 8, %s15
        %p362 = scmp.lt.s32.totalorder %s361, 15
        %s363 = scalar_select %p362, %s361, 15
        %s364 = smul.addr %s363, 8
        %s365 = scalar_lea.vmem %s3, %s364
      $region44: #{deformable_patch_merging.1} parent=39 // pred_fallthru
        _
    $region40: #{deformable_patch_merging.1} parent=5 // pred_fallthru
      _
  $region6: #{deformable_patch_merging.1} parent=0 // loop_footer
    %s13 = sadd.s32 1, %s9
  $region7: #{deformable_patch_merging.1} parent=0 // loop_footer_branch
    %8 = sbr.rel target = $region3
  $region8: #{deformable_patch_merging.1} parent=0 // loop_exit
    _

</llo_original>
